<compile_context>
chip_gen: v6e
topology: v6e:2x2x1
jax: 0.10.0
libtpu: 0.0.40
codegen_flags: <defaults>
</compile_context>

<pallas_src>
import math
import functools
import numpy as np

import jax
import jax.numpy as jnp
from jax.experimental import pallas as pl
from jax.experimental.pallas import tpu as pltpu


# ----------------------------------------------------------------------------
# Pallas kernels
# ----------------------------------------------------------------------------
def _conv3x3_bn_relu_kernel(x_ref, w_ref, scale_ref, shift_ref, o_ref, xpad_ref):
    """3x3 conv (stride 1, pad 1 built in-kernel) + folded BN + ReLU.

    Single im2col matmul: the 9 shifted taps are concatenated along the lane
    (channel) axis so the MXU sees one contraction of depth K = 9*Cin; operands
    are cast to bf16 for the bf16-native MXU while accumulation / BN / ReLU stay
    in f32.  The zero halo lives in a VMEM scratch (no HBM padded copy).

    x_ref:     (1, H, W, Cin)       unpadded input tile (one batch element), f32
    w_ref:     (9*Cin, Cout)        im2col-reshaped weight (tap-major), bf16
    scale_ref: (1, Cout)            BN scale (gamma / sqrt(var + eps)), f32
    shift_ref: (1, Cout)            BN shift (beta - mean*scale + conv_bias*scale), f32
    o_ref:     (1, H, W, Cout)
    xpad_ref:  (H+2, W+2, Cin)      VMEM scratch holding the 1-px-padded tile
    """
    H, W, Cout = o_ref.shape[1], o_ref.shape[2], o_ref.shape[3]
    Cin = x_ref.shape[3]

    # Build the padded tile in VMEM (zero everything, then overwrite the interior).
    # Full zero each step keeps this correct under any grid sharding (megacore).
    xpad_ref[...] = jnp.zeros_like(xpad_ref)
    xpad_ref[1:H + 1, 1:W + 1, :] = x_ref[0]
    xp = xpad_ref[...].astype(jnp.bfloat16)                    # (H+2, W+2, Cin)

    slabs = []
    for dy in range(3):
        for dx in range(3):
            slabs.append(xp[dy:dy + H, dx:dx + W, :])          # (H, W, Cin)
    patches = jnp.concatenate(slabs, axis=-1).reshape(H * W, 9 * Cin)
    acc = jnp.dot(patches, w_ref[...], preferred_element_type=jnp.float32)
    y = acc * scale_ref[0, :] + shift_ref[0, :]
    o_ref[...] = jnp.maximum(y, 0.0).reshape(1, H, W, Cout).astype(o_ref.dtype)


def _phase_taps(f):
    """Per-output-phase 2-tap weights of the bilinear ConvTranspose2d
    (kernel=2f, stride=f, pad=f//2, fill_up_weights init) along one axis.

    Returns [(start, w_a, w_b)] per phase r: the phase reads rows `start` and
    `start+1` of the 1-pixel-zero-padded input (start indexes the padded array).
    """
    K, p = 2 * f, f // 2
    fc = math.ceil(K / 2)                        # == f (as in fill_up_weights)
    c = (2 * fc - 1 - fc % 2) / (2.0 * fc)
    w1d = [1.0 - abs(k / fc - c) for k in range(K)]
    taps = []
    for r in range(f):
        if r < f - p:                            # taps at input offsets (-1, 0)
            taps.append((0, float(w1d[r + p + f]), float(w1d[r + p])))
        else:                                    # taps at input offsets (0, +1)
            taps.append((1, float(w1d[r + p]), float(w1d[r + p - f])))
    return taps


# ----------------------------------------------------------------------------
# Cached pallas_call builders (avoid re-trace per identical-shape call)
# ----------------------------------------------------------------------------
@functools.lru_cache(maxsize=None)
def _build_conv_call(N, H, W, Cin, Cout, dtype_name):
    dtype = jnp.dtype(dtype_name)
    flops = 2 * N * H * W * 9 * Cin * Cout
    bytes_accessed = (4 * N * H * W * Cin
                      + 2 * 9 * Cin * Cout
                      + 4 * N * H * W * Cout)
    return pl.pallas_call(
        _conv3x3_bn_relu_kernel,
        out_shape=jax.ShapeDtypeStruct((N, H, W, Cout), dtype),
        grid=(N,),
        in_specs=[
            pl.BlockSpec((1, H, W, Cin), lambda n: (n, 0, 0, 0)),
            pl.BlockSpec((9 * Cin, Cout), lambda n: (0, 0)),
            pl.BlockSpec((1, Cout), lambda n: (0, 0)),
            pl.BlockSpec((1, Cout), lambda n: (0, 0)),
        ],
        out_specs=pl.BlockSpec((1, H, W, Cout), lambda n: (n, 0, 0, 0)),
        scratch_shapes=[pltpu.VMEM((H + 2, W + 2, Cin), jnp.float32)],
        compiler_params=pltpu.CompilerParams(dimension_semantics=("parallel",)),
        cost_estimate=pl.CostEstimate(flops=int(flops), transcendentals=0,
                                      bytes_accessed=int(bytes_accessed)),
    )


@functools.lru_cache(maxsize=None)
def _build_upsample_add_call(N, H, W, C, f, dtype_name):
    """out = bilinear ConvTranspose2d(x, factor=f) + skip, as one Pallas kernel.

    Phase decomposition: output row/col phase r mixes exactly 2 input rows/cols
    with constant weights, so the kernel does 4 MACs per output element on the
    *undilated* input instead of (2f)^2 MACs on an f^2-larger zero-dilated array,
    and never materializes the dilated tensor in HBM.  The IDAUp skip add is
    fused into the epilogue.  The 1-px halo is built in a VMEM scratch (no HBM pad).

    Output layout trick: the kernel writes a (1, H*f, W, f*C) block whose linear
    order equals (N, H*f, W*f, C); column phases are interleaved with a lane-axis
    concat, row phases with a leading-axis stack, and the wrapper reshape is free.
    """
    taps = _phase_taps(f)
    OH, OW = H * f, W * f
    dtype = jnp.dtype(dtype_name)

    def kernel(x_ref, skip_ref, o_ref, xpad_ref):
        # x_ref: (1, H, W, C);  skip_ref / o_ref: (1, H*f, W, f*C)
        xpad_ref[...] = jnp.zeros_like(xpad_ref)
        xpad_ref[1:H + 1, 1:W + 1, :] = x_ref[0].astype(jnp.float32)
        x = xpad_ref[...]                                     # (H+2, W+2, C) f32
        row_slabs = []
        for (sy, wya, wyb) in taps:                           # row phase ry
            t = wya * x[sy:sy + H, :, :] + wyb * x[sy + 1:sy + 1 + H, :, :]
            cols = []
            for (sx, wxa, wxb) in taps:                       # col phase rx
                cols.append(wxa * t[:, sx:sx + W, :] + wxb * t[:, sx + 1:sx + 1 + W, :])
            row_slabs.append(jnp.concatenate(cols, axis=-1))      # (H, W, f*C)
        up = jnp.stack(row_slabs, axis=1).reshape(OH, W, f * C)   # (H*f, W, f*C)
        o_ref[0] = (up + skip_ref[0].astype(jnp.float32)).astype(o_ref.dtype)

    flops = 6 * N * OH * OW * C
    bytes_accessed = 4 * N * (H * W * C + 2 * OH * OW * C)
    return pl.pallas_call(
        kernel,
        out_shape=jax.ShapeDtypeStruct((N, OH, W, f * C), dtype),
        grid=(N,),
        in_specs=[
            pl.BlockSpec((1, H, W, C), lambda n: (n, 0, 0, 0)),
            pl.BlockSpec((1, OH, W, f * C), lambda n: (n, 0, 0, 0)),
        ],
        out_specs=pl.BlockSpec((1, OH, W, f * C), lambda n: (n, 0, 0, 0)),
        scratch_shapes=[pltpu.VMEM((H + 2, W + 2, C), jnp.float32)],
        compiler_params=pltpu.CompilerParams(dimension_semantics=("parallel",)),
        cost_estimate=pl.CostEstimate(flops=int(flops), transcendentals=0,
                                      bytes_accessed=int(bytes_accessed)),
    )


# ----------------------------------------------------------------------------
# Wrappers (glue: free reshapes / layout only — no HBM padding copies)
# ----------------------------------------------------------------------------
def conv3x3_bn_relu(x, w_mat, scale, shift):
    """x: (N,H,W,Cin) NHWC f32, w_mat: (9*Cin,Cout) bf16 -> (N,H,W,Cout) f32."""
    N, H, W, Cin = x.shape
    Cout = w_mat.shape[-1]
    return _build_conv_call(N, H, W, Cin, Cout, str(x.dtype))(x, w_mat, scale, shift)


def bilinear_upsample_add(x, skip, f):
    """Depthwise bilinear ConvTranspose2d(C, C, 2f, stride=f, pad=f//2, groups=C,
    bias=False) with fill_up_weights init, plus the IDAUp residual `+ skip`.
    x: (N,H,W,C) NHWC -> (N,H*f,W*f,C) == skip.shape."""
    N, H, W, C = x.shape
    assert f >= 2 and f % 2 == 0, "DLA upsample factors are powers of two >= 2"
    OH, OW = H * f, W * f
    assert skip.shape == (N, OH, OW, C)
    skip_r = skip.reshape(N, OH, W, f * C)              # free: row-major compatible
    out = _build_upsample_add_call(N, H, W, C, int(f), str(x.dtype))(x, skip_r)
    return out.reshape(N, OH, OW, C)                    # free


# ----------------------------------------------------------------------------
# Parameter construction (deterministic, mirrors the PyTorch __init__ shapes)
# ----------------------------------------------------------------------------
def bilinear_up_weight(f):
    """fill_up_weights 2-D plane (used only by the lax reference check)."""
    K = 2 * f
    fc = math.ceil(K / 2)
    c = (2 * fc - 1 - fc % 2) / (2.0 * fc)
    w = np.zeros((K, K), np.float32)
    for i in range(K):
        for j in range(K):
            w[i, j] = (1 - abs(i / fc - c)) * (1 - abs(j / fc - c))
    return jnp.asarray(w)


def make_deform_conv_params(key, chi, cho):
    """DeformConv = DCN(chi, cho, 3x3) + BatchNorm2d(cho) + ReLU (eval-mode BN folded)."""
    k1, k2 = jax.random.split(key)
    w = jax.random.normal(k1, (3, 3, chi, cho), jnp.float32) * 0.1     # HWIO
    b = jax.random.normal(k2, (cho,), jnp.float32) * 0.1
    eps = 1e-5
    gamma = jnp.ones((cho,), jnp.float32)
    beta = jnp.zeros((cho,), jnp.float32)
    running_mean = jnp.zeros((cho,), jnp.float32)
    running_var = jnp.ones((cho,), jnp.float32)
    scale = gamma / jnp.sqrt(running_var + eps)
    shift = beta - running_mean * scale + b * scale     # conv bias folded through BN
    return dict(
        w=w,                                                        # HWIO f32 (reference)
        w_mat=w.reshape(9 * chi, cho).astype(jnp.bfloat16),          # im2col weight (MXU)
        scale=scale.reshape(1, cho),
        shift=shift.reshape(1, cho),
    )


def build_idaup_params(key, o, channels, up_f):
    mods = {}
    for i in range(1, len(channels)):
        c = int(channels[i])
        f = int(up_f[i])
        key, k1, k2 = jax.random.split(key, 3)
        mods[i] = dict(
            proj=make_deform_conv_params(k1, c, o),   # c -> o
            node=make_deform_conv_params(k2, o, o),   # o -> o
            up_f=f,
        )
    return mods


def build_dlaup_params(key, startp, channels, scales, in_channels=None):
    channels = list(channels)
    if in_channels is None:
        in_channels = list(channels)
    else:
        in_channels = list(in_channels)
    scales = np.array(scales, dtype=int)
    idas = []
    for i in range(len(channels) - 1):
        j = -i - 2
        key, sub = jax.random.split(key)
        idas.append(build_idaup_params(sub, channels[j], in_channels[j:],
                                       list(scales[j:] // scales[j])))
        scales[j + 1:] = scales[j]
        in_channels[j + 1:] = [channels[j] for _ in channels[j + 1:]]
    return dict(startp=startp, idas=idas)


# ----------------------------------------------------------------------------
# Forward (mirrors IDAUp.forward / DLAUp.forward exactly)
# ----------------------------------------------------------------------------
def ida_up_apply(params, layers, startp, endp):
    for i in range(startp + 1, endp):
        m = params[i - startp]
        p = m['proj']
        y = conv3x3_bn_relu(layers[i], p['w_mat'], p['scale'], p['shift'])   # project(layers[i])
        # upsample(...) with the `+ layers[i-1]` residual fused into the kernel epilogue
        y = bilinear_upsample_add(y, layers[i - 1], m['up_f'])
        n = m['node']
        layers[i] = conv3x3_bn_relu(y, n['w_mat'], n['scale'], n['shift'])   # node(sum)


def dlaup_forward(params, layers):
    layers = list(layers)
    startp = params['startp']
    out = [layers[-1]]
    for i in range(len(layers) - startp - 1):
        ida = params['idas'][i]
        ida_up_apply(ida, layers, len(layers) - i - 2, len(layers))
        out.insert(0, layers[-1])
    return out


# ----------------------------------------------------------------------------
# Pure-JAX references (lightweight numerical sanity checks)
# ----------------------------------------------------------------------------
def _ref_conv3x3_bn_relu(x, w_hwio, scale, shift):
    # bf16 operands / f32 accumulation, matching the kernel's MXU path.
    y = jax.lax.conv_general_dilated(
        x.astype(jnp.bfloat16), w_hwio.astype(jnp.bfloat16),
        window_strides=(1, 1), padding=((1, 1), (1, 1)),
        dimension_numbers=('NHWC', 'HWIO', 'NHWC'),
        preferred_element_type=jnp.float32)
    y = y * scale.reshape(1, 1, 1, -1) + shift.reshape(1, 1, 1, -1)
    return jnp.maximum(y, 0.0)


def _ref_upsample(x, w2d, f):
    N, H, W, C = x.shape
    K, p = 2 * f, f // 2
    pad = K - 1 - p
    rhs = jnp.broadcast_to(w2d[::-1, ::-1][:, :, None, None], (K, K, 1, C))
    return jax.lax.conv_general_dilated(
        x, rhs, window_strides=(1, 1), padding=((pad, pad), (pad, pad)),
        lhs_dilation=(f, f), dimension_numbers=('NHWC', 'HWIO', 'NHWC'),
        feature_group_count=C, precision=jax.lax.Precision.HIGHEST)


# ----------------------------------------------------------------------------
if __name__ == "__main__":
    key = jax.random.PRNGKey(0)
    channels = [4, 8, 16]           # DLA-style pyramid channels
    scales = [1, 2, 4]
    startp = 0
    N, base = 2, 16

    k_layers, k_params = jax.random.split(key)
    layers_nchw = []
    for li, c in enumerate(channels):
        k_layers, sub = jax.random.split(k_layers)
        s = base // (2 ** li)
        layers_nchw.append(jax.random.normal(sub, (N, c, s, s), jnp.float32))

    # NCHW (PyTorch) -> NHWC (kernel layout)
    layers = [jnp.transpose(x, (0, 2, 3, 1)) for x in layers_nchw]

    params = build_dlaup_params(k_params, startp, channels, scales)

    # per-kernel numerical checks against lax references
    m0 = params['idas'][0][1]
    p0 = m0['proj']
    chk = conv3x3_bn_relu(layers[2], p0['w_mat'], p0['scale'], p0['shift'])
    ref = _ref_conv3x3_bn_relu(layers[2], p0['w'], p0['scale'], p0['shift'])
    assert jnp.allclose(chk, ref, atol=2e-2, rtol=2e-2), "conv3x3 kernel mismatch"

    f0 = m0['up_f']
    chk_up = bilinear_upsample_add(chk, layers[1], f0)
    ref_up = _ref_upsample(chk, bilinear_up_weight(f0), f0) + layers[1]
    assert jnp.allclose(chk_up, ref_up, atol=1e-4, rtol=1e-4), "upsample+add kernel mismatch"

    out_nhwc = dlaup_forward(params, layers)
    out = [jnp.transpose(o, (0, 3, 1, 2)) for o in out_nhwc]   # back to NCHW
    for o in out:
        jax.block_until_ready(o)

    expected = [(N, 4, 16, 16), (N, 8, 8, 8), (N, 16, 4, 4)]
    assert [tuple(o.shape) for o in out] == expected, [tuple(o.shape) for o in out]

    print("KERNEL_OK")
</pallas_src>

<mosaic_0001>
module attributes {stable_mosaic.version = 11 : i64} {
  func.func @_conv3x3_bn_relu_kernel(%arg0: i32, %arg1: memref<1x4x4x16xf32, #tpu.memory_space<vmem>>, %arg2: memref<144x8xbf16, #tpu.memory_space<vmem>>, %arg3: memref<1x8xf32, #tpu.memory_space<vmem>>, %arg4: memref<1x8xf32, #tpu.memory_space<vmem>>, %arg5: memref<1x4x4x8xf32, #tpu.memory_space<vmem>>, %arg6: memref<6x6x16xf32, #tpu.memory_space<vmem>>) attributes {dimension_semantics = [#tpu.dimension_semantics<parallel>], iteration_bounds = array<i64: 2>, scalar_prefetch = 0 : i64, scratch_operands = 1 : i64, tpu.core_type = #tpu.core_type<tc>, window_params = [{transform_indices = @transform_0, window_bounds = array<i64: 1, 4, 4, 16>}, {pipeline_mode = #tpu.pipeline_mode<synchronous>, transform_indices = @transform_1, window_bounds = array<i64: 144, 8>}, {pipeline_mode = #tpu.pipeline_mode<synchronous>, transform_indices = @transform_2, window_bounds = array<i64: 1, 8>}, {pipeline_mode = #tpu.pipeline_mode<synchronous>, transform_indices = @transform_3, window_bounds = array<i64: 1, 8>}, {transform_indices = @transform_4, window_bounds = array<i64: 1, 4, 4, 8>}]} {
    %cst = arith.constant 0.000000e+00 : f32
    %0 = vector.broadcast %cst : f32 to vector<6x6x16xf32>
    %c0 = arith.constant 0 : index
    %c0_0 = arith.constant 0 : index
    %c0_1 = arith.constant 0 : index
    %1 = vector.load %arg6[%c0, %c0_0, %c0_1] : memref<6x6x16xf32, #tpu.memory_space<vmem>>, vector<6x6x16xf32>
    tpu.vector_store %arg6[%c0, %c0_0, %c0_1], %0 {strides = array<i32>} : memref<6x6x16xf32, #tpu.memory_space<vmem>>, vector<6x6x16xf32>,
    %c0_2 = arith.constant 0 : index
    %c0_3 = arith.constant 0 : index
    %c0_4 = arith.constant 0 : index
    %c0_5 = arith.constant 0 : index
    %2 = vector.load %arg1[%c0_2, %c0_3, %c0_4, %c0_5] : memref<1x4x4x16xf32, #tpu.memory_space<vmem>>, vector<1x4x4x16xf32>
    %3 = vector.shape_cast %2 : vector<1x4x4x16xf32> to vector<4x4x16xf32>
    %c1 = arith.constant 1 : index
    %c1_6 = arith.constant 1 : index
    %c0_7 = arith.constant 0 : index
    %4 = vector.load %arg6[%c1, %c1_6, %c0_7] : memref<6x6x16xf32, #tpu.memory_space<vmem>>, vector<4x4x16xf32>
    tpu.vector_store %arg6[%c1, %c1_6, %c0_7], %3 {strides = array<i32>} : memref<6x6x16xf32, #tpu.memory_space<vmem>>, vector<4x4x16xf32>,
    %c0_8 = arith.constant 0 : index
    %c0_9 = arith.constant 0 : index
    %c0_10 = arith.constant 0 : index
    %5 = vector.load %arg6[%c0_8, %c0_9, %c0_10] : memref<6x6x16xf32, #tpu.memory_space<vmem>>, vector<6x6x16xf32>
    %6 = arith.truncf %5 : vector<6x6x16xf32> to vector<6x6x16xbf16>
    %7 = vector.extract_strided_slice %6 {offsets = [0, 0, 0], sizes = [4, 4, 16], strides = [1, 1, 1]} : vector<6x6x16xbf16> to vector<4x4x16xbf16>
    %8 = vector.extract_strided_slice %6 {offsets = [0, 1, 0], sizes = [4, 4, 16], strides = [1, 1, 1]} : vector<6x6x16xbf16> to vector<4x4x16xbf16>
    %9 = vector.extract_strided_slice %6 {offsets = [0, 2, 0], sizes = [4, 4, 16], strides = [1, 1, 1]} : vector<6x6x16xbf16> to vector<4x4x16xbf16>
    %10 = vector.extract_strided_slice %6 {offsets = [1, 0, 0], sizes = [4, 4, 16], strides = [1, 1, 1]} : vector<6x6x16xbf16> to vector<4x4x16xbf16>
    %11 = vector.extract_strided_slice %6 {offsets = [1, 1, 0], sizes = [4, 4, 16], strides = [1, 1, 1]} : vector<6x6x16xbf16> to vector<4x4x16xbf16>
    %12 = vector.extract_strided_slice %6 {offsets = [1, 2, 0], sizes = [4, 4, 16], strides = [1, 1, 1]} : vector<6x6x16xbf16> to vector<4x4x16xbf16>
    %13 = vector.extract_strided_slice %6 {offsets = [2, 0, 0], sizes = [4, 4, 16], strides = [1, 1, 1]} : vector<6x6x16xbf16> to vector<4x4x16xbf16>
    %14 = vector.extract_strided_slice %6 {offsets = [2, 1, 0], sizes = [4, 4, 16], strides = [1, 1, 1]} : vector<6x6x16xbf16> to vector<4x4x16xbf16>
    %15 = vector.extract_strided_slice %6 {offsets = [2, 2, 0], sizes = [4, 4, 16], strides = [1, 1, 1]} : vector<6x6x16xbf16> to vector<4x4x16xbf16>
    %16 = tpu.concatenate %7, %8, %9, %10, %11, %12, %13, %14, %15 in 2 : vector<4x4x16xbf16>, vector<4x4x16xbf16>, vector<4x4x16xbf16>, vector<4x4x16xbf16>, vector<4x4x16xbf16>, vector<4x4x16xbf16>, vector<4x4x16xbf16>, vector<4x4x16xbf16>, vector<4x4x16xbf16> -> vector<4x4x144xbf16>
    %17 = vector.shape_cast %16 : vector<4x4x144xbf16> to vector<16x144xbf16>
    %c0_11 = arith.constant 0 : index
    %c0_12 = arith.constant 0 : index
    %18 = vector.load %arg2[%c0_11, %c0_12] : memref<144x8xbf16, #tpu.memory_space<vmem>>, vector<144x8xbf16>
    %cst_13 = arith.constant dense<0.000000e+00> : vector<16x8xf32>
    %19 = tpu.matmul %17, %18, %cst_13 {dimension_numbers = #tpu.dot_dimension_numbers<[1], [0], [0], [1], [0, 0, 1, 1], [], []>} : vector<16x144xbf16>, vector<144x8xbf16>, vector<16x8xf32> -> vector<16x8xf32>
    %c0_14 = arith.constant 0 : index
    %c0_15 = arith.constant 0 : index
    %20 = vector.load %arg3[%c0_14, %c0_15] : memref<1x8xf32, #tpu.memory_space<vmem>>, vector<1x8xf32>
    %21 = vector.shape_cast %20 : vector<1x8xf32> to vector<8xf32>
    %22 = vector.shape_cast %21 : vector<8xf32> to vector<1x8xf32>
    %23 = vector.broadcast %22 : vector<1x8xf32> to vector<16x8xf32>
    %24 = arith.mulf %19, %23 : vector<16x8xf32>
    %c0_16 = arith.constant 0 : index
    %c0_17 = arith.constant 0 : index
    %25 = vector.load %arg4[%c0_16, %c0_17] : memref<1x8xf32, #tpu.memory_space<vmem>>, vector<1x8xf32>
    %26 = vector.shape_cast %25 : vector<1x8xf32> to vector<8xf32>
    %27 = vector.shape_cast %26 : vector<8xf32> to vector<1x8xf32>
    %28 = vector.broadcast %27 : vector<1x8xf32> to vector<16x8xf32>
    %29 = arith.addf %24, %28 : vector<16x8xf32>
    %cst_18 = arith.constant 0.000000e+00 : f32
    %30 = vector.broadcast %cst_18 : f32 to vector<16x8xf32>
    %31 = arith.maximumf %29, %30 : vector<16x8xf32>
    %32 = vector.shape_cast %31 : vector<16x8xf32> to vector<1x4x4x8xf32>
    %c0_19 = arith.constant 0 : index
    %c0_20 = arith.constant 0 : index
    %c0_21 = arith.constant 0 : index
    %c0_22 = arith.constant 0 : index
    %33 = vector.load %arg5[%c0_19, %c0_20, %c0_21, %c0_22] : memref<1x4x4x8xf32, #tpu.memory_space<vmem>>, vector<1x4x4x8xf32>
    tpu.vector_store %arg5[%c0_19, %c0_20, %c0_21, %c0_22], %32 {strides = array<i32>} : memref<1x4x4x8xf32, #tpu.memory_space<vmem>>, vector<1x4x4x8xf32>,
    return
  }
  func.func @transform_0(%arg0: i32) -> (i32, i32, i32, i32) {
    %c0_i32 = arith.constant 0 : i32
    %c0_i32_0 = arith.constant 0 : i32
    %c0_i32_1 = arith.constant 0 : i32
    %c0_i32_2 = arith.constant 0 : i32
    return %arg0, %c0_i32, %c0_i32_0, %c0_i32_1 : i32, i32, i32, i32
  }
  func.func @transform_1(%arg0: i32) -> (i32, i32) {
    %c0_i32 = arith.constant 0 : i32
    %c0_i32_0 = arith.constant 0 : i32
    %c0_i32_1 = arith.constant 0 : i32
    return %c0_i32, %c0_i32_0 : i32, i32
  }
  func.func @transform_2(%arg0: i32) -> (i32, i32) {
    %c0_i32 = arith.constant 0 : i32
    %c0_i32_0 = arith.constant 0 : i32
    %c0_i32_1 = arith.constant 0 : i32
    return %c0_i32, %c0_i32_0 : i32, i32
  }
  func.func @transform_3(%arg0: i32) -> (i32, i32) {
    %c0_i32 = arith.constant 0 : i32
    %c0_i32_0 = arith.constant 0 : i32
    %c0_i32_1 = arith.constant 0 : i32
    return %c0_i32, %c0_i32_0 : i32, i32
  }
  func.func @transform_4(%arg0: i32) -> (i32, i32, i32, i32) {
    %c0_i32 = arith.constant 0 : i32
    %c0_i32_0 = arith.constant 0 : i32
    %c0_i32_1 = arith.constant 0 : i32
    %c0_i32_2 = arith.constant 0 : i32
    return %arg0, %c0_i32, %c0_i32_0, %c0_i32_1 : i32, i32, i32, i32
  }
}

</mosaic_0001>

<llo_original>
// kernel: tpu_custom_call.1
$region0: #{tpu_custom_call.1}
  #allocation0 [shape = 'u32[]', space=smem, size = 0x4, offset = 0x4, fixed_abs, tag = 'smem constant byte address 0x4 - core index']
  #allocation1 [shape = 'u32[144,128]{1,0:T(1,128)}', space=vmem, size = 0x12000, scoped, tag = 'internal scratch']
  #allocation2 [shape = 'f32[6,6,16]{2,1,0:T(8,128)}', space=vmem, size = 0x6000, scoped, tag = 'scratch operand']
  %s0 = inlined_call_operand.vmem [shape: f32[2,4,4,16], index: 0, kind: input, shape index: {}]
  %s1 = inlined_call_operand.vmem [shape: bf16[144,8], index: 1, kind: input, shape index: {}]
  %s2 = inlined_call_operand.vmem [shape: f32[1,8], index: 2, kind: input, shape index: {}]
  %s3 = inlined_call_operand.vmem [shape: f32[1,8], index: 3, kind: input, shape index: {}]
  %s4 = inlined_call_operand.hbm [shape: f32[2,4,4,8], index: 4, kind: output, shape index: {}]
  %s5 = sld [smem:[#allocation0]]
  $region49: #{tpu_custom_call.1} parent=0
    _
  %s7 = ssub.s32 1, %s5
  %s8 = scalar_select 0, %s7, %s5
  $region1: #{tpu_custom_call.1} parent=0
    #allocation3 [shape = 'u8[16384]{0}', space=vmem, size = 0x4000, scoped, tag = 'output window, operand 0']
    #allocation4 [shape = 's32[2]{0}', space=sflag, size = 0x8, scoped, tag = 'scoped memory for tpu_custom_call.1']
    %9 = vsyncpa [#allocation4], 0
    %s10 = scalar_lea.sflag [#allocation4], 1
    %11 = vsyncpa %s10, 0
    loop: start=0, step=1, limit=4
    $region2: #{tpu_custom_call.1} parent=1 // loop_pre_header
      _
    $region3: #{tpu_custom_call.1} parent=1 // loop_header
      %s13 = sphi 0, %s17
      %p14 = scmp.ge.s32.totalorder %s13, 4
      %s23 = sphi 0, %s25
      %s26 = sphi 0, %s23
      %s27 = sphi 0, %s26
      %s43 = sphi 0, %s27
      %s47 = sphi 0, %s47
      %s49 = sphi 0, %s47
      %s50 = sphi 0, %s49
      %s64 = sphi 0, %s50
      %s68 = sphi 0, %s68
      %s70 = sphi 0, %s68
      %s71 = sphi 0, %s70
      %s85 = sphi 0, %s71
      %s89 = sphi 0, %s89
      %s91 = sphi 0, %s89
      %s92 = sphi 0, %s91
      %s106 = sphi 0, %s92
      %s112 = sphi 0, %s114
      %s115 = sphi 0, %s112
      %s116 = sphi 0, %s115
      %s132 = sphi 0, %s116
    $region4: #{tpu_custom_call.1} parent=1 // loop_header_branch
      %16 = sbr.rel (%p14) target = $region8
    $region5: #{tpu_custom_call.1} parent=1 // loop_body
      %s18 = ssub.s32 %s13, 1
      %s19 = ssub.s32 %s13, 2
      %s20 = sadd.s32 %s13, 1
      %s21 = ssub.s32 %s13, %s20
      %p22 = scmp.eq.s32.totalorder %s21, 0
      %s24 = sadd.s32 %s23, 1
      %s25 = scalar_select %p22, %s23, %s24
      %p28 = pneg %p22
      %p29 = scmp.eq.s32.totalorder %s13, 1
      %p30 = por %p28, %p29
      %p31 = scmp.ne.s32.totalorder %s23, %s26
      %p32 = scmp.eq.s32.totalorder %s13, 0
      %p33 = por %p31, %p32
      %p34 = scmp.ne.s32.totalorder %s23, %s26
      %p35 = scmp.eq.s32.totalorder %s18, 1
      %p36 = por %p34, %p35
      %p37 = scmp.ne.s32.totalorder %s26, %s27
      %p38 = scmp.eq.s32.totalorder %s18, 0
      %p39 = por %p37, %p38
      %p40 = scmp.ne.s32.totalorder %s26, %s27
      %p41 = scmp.eq.s32.totalorder %s19, 1
      %p42 = por %p40, %p41
      %p44 = scmp.ne.s32.totalorder %s27, %s43
      %p45 = scmp.eq.s32.totalorder %s19, 0
      %p46 = por %p44, %p45
      %s48 = sadd.s32 %s47, 1
      %p51 = scmp.eq.s32.totalorder %s13, 1
      %p52 = scmp.ne.s32.totalorder %s47, %s49
      %p53 = scmp.eq.s32.totalorder %s13, 0
      %p54 = por %p52, %p53
      %p55 = scmp.ne.s32.totalorder %s47, %s49
      %p56 = scmp.eq.s32.totalorder %s18, 1
      %p57 = por %p55, %p56
      %p58 = scmp.ne.s32.totalorder %s49, %s50
      %p59 = scmp.eq.s32.totalorder %s18, 0
      %p60 = por %p58, %p59
      %p61 = scmp.ne.s32.totalorder %s49, %s50
      %p62 = scmp.eq.s32.totalorder %s19, 1
      %p63 = por %p61, %p62
      %p65 = scmp.ne.s32.totalorder %s50, %s64
      %p66 = scmp.eq.s32.totalorder %s19, 0
      %p67 = por %p65, %p66
      %s69 = sadd.s32 %s68, 1
      %p72 = scmp.eq.s32.totalorder %s13, 1
      %p73 = scmp.ne.s32.totalorder %s68, %s70
      %p74 = scmp.eq.s32.totalorder %s13, 0
      %p75 = por %p73, %p74
      %p76 = scmp.ne.s32.totalorder %s68, %s70
      %p77 = scmp.eq.s32.totalorder %s18, 1
      %p78 = por %p76, %p77
      %p79 = scmp.ne.s32.totalorder %s70, %s71
      %p80 = scmp.eq.s32.totalorder %s18, 0
      %p81 = por %p79, %p80
      %p82 = scmp.ne.s32.totalorder %s70, %s71
      %p83 = scmp.eq.s32.totalorder %s19, 1
      %p84 = por %p82, %p83
      %p86 = scmp.ne.s32.totalorder %s71, %s85
      %p87 = scmp.eq.s32.totalorder %s19, 0
      %p88 = por %p86, %p87
      %s90 = sadd.s32 %s89, 1
      %p93 = scmp.eq.s32.totalorder %s13, 1
      %p94 = scmp.ne.s32.totalorder %s89, %s91
      %p95 = scmp.eq.s32.totalorder %s13, 0
      %p96 = por %p94, %p95
      %p97 = scmp.ne.s32.totalorder %s89, %s91
      %p98 = scmp.eq.s32.totalorder %s18, 1
      %p99 = por %p97, %p98
      %p100 = scmp.ne.s32.totalorder %s91, %s92
      %p101 = scmp.eq.s32.totalorder %s18, 0
      %p102 = por %p100, %p101
      %p103 = scmp.ne.s32.totalorder %s91, %s92
      %p104 = scmp.eq.s32.totalorder %s19, 1
      %p105 = por %p103, %p104
      %p107 = scmp.ne.s32.totalorder %s92, %s106
      %p108 = scmp.eq.s32.totalorder %s19, 0
      %p109 = por %p107, %p108
      %s110 = ssub.s32 %s13, %s20
      %p111 = scmp.eq.s32.totalorder %s110, 0
      %s113 = sadd.s32 %s112, 1
      %s114 = scalar_select %p111, %s112, %s113
      %p117 = pneg %p111
      %p118 = scmp.eq.s32.totalorder %s13, 1
      %p119 = por %p117, %p118
      %p120 = scmp.ne.s32.totalorder %s112, %s115
      %p121 = scmp.eq.s32.totalorder %s13, 0
      %p122 = por %p120, %p121
      %p123 = scmp.ne.s32.totalorder %s112, %s115
      %p124 = scmp.eq.s32.totalorder %s18, 1
      %p125 = por %p123, %p124
      %p126 = scmp.ne.s32.totalorder %s115, %s116
      %p127 = scmp.eq.s32.totalorder %s18, 0
      %p128 = por %p126, %p127
      %p129 = scmp.ne.s32.totalorder %s115, %s116
      %p130 = scmp.eq.s32.totalorder %s19, 1
      %p131 = por %p129, %p130
      %p133 = scmp.ne.s32.totalorder %s116, %s132
      %p134 = scmp.eq.s32.totalorder %s19, 0
      %p135 = por %p133, %p134
      %p136 = scmp.le.s32.totalorder 1, %s13
      %p137 = scmp.lt.s32.totalorder %s13, 3
      %p138 = pnand %p136, %p137
      %p139 = pneg %p138
      // Predicated region
      $region9: #{tpu_custom_call.1} parent=5 // pred_check
        _
      $region10: #{tpu_custom_call.1} parent=5 // pred_check_branch
        %141 = sbr.rel (%p138) target = $region12
      $region11: #{tpu_custom_call.1} parent=5 // pred_region
        %s142 = ssub.s32 %s13, 1
        // Predicated region
        $region13: #{tpu_custom_call.1} parent=11 // pred_check
          %p143 = pneg %p60
        $region14: #{tpu_custom_call.1} parent=11 // pred_check_branch
          %145 = sbr.rel (%p143) target = $region16
        $region15: #{tpu_custom_call.1} parent=11 // pred_region
          _
        $region16: #{tpu_custom_call.1} parent=11 // pred_fallthru
          _
        // Predicated region
        $region17: #{tpu_custom_call.1} parent=11 // pred_check
          %p146 = pneg %p81
        $region18: #{tpu_custom_call.1} parent=11 // pred_check_branch
          %148 = sbr.rel (%p146) target = $region20
        $region19: #{tpu_custom_call.1} parent=11 // pred_region
          _
        $region20: #{tpu_custom_call.1} parent=11 // pred_fallthru
          _
        // Predicated region
        $region21: #{tpu_custom_call.1} parent=11 // pred_check
          %p149 = pneg %p102
        $region22: #{tpu_custom_call.1} parent=11 // pred_check_branch
          %151 = sbr.rel (%p149) target = $region24
        $region23: #{tpu_custom_call.1} parent=11 // pred_region
          _
        $region24: #{tpu_custom_call.1} parent=11 // pred_fallthru
          _
      $region12: #{tpu_custom_call.1} parent=5 // pred_fallthru
        _
      %p152 = scmp.lt.s32.totalorder %s13, 2
      // Predicated region
      $region25: #{tpu_custom_call.1} parent=5 // pred_check
        %p153 = pneg %p152
      $region26: #{tpu_custom_call.1} parent=5 // pred_check_branch
        %155 = sbr.rel (%p153) target = $region28
      $region27: #{tpu_custom_call.1} parent=5 // pred_region
        // Predicated region
        $region29: #{tpu_custom_call.1} parent=27 // pred_check
          %p156 = pneg %p33
        $region30: #{tpu_custom_call.1} parent=27 // pred_check_branch
          %158 = sbr.rel (%p156) target = $region32
        $region31: #{tpu_custom_call.1} parent=27 // pred_region
          %p159 = scmp.lt.s32.totalorder %s13, 1
          %s160 = scalar_select %p159, %s13, 1
          %s161 = smul.addr %s160, 4
          %s162 = smul.addr %s161, 4
          %s163 = scalar_lea.vmem %s0, %s162
        $region32: #{tpu_custom_call.1} parent=27 // pred_fallthru
          _
      $region28: #{tpu_custom_call.1} parent=5 // pred_fallthru
        _
      %p164 = scmp.le.s32.totalorder 1, %s13
      %p165 = scmp.lt.s32.totalorder %s13, 3
      %p166 = pnand %p164, %p165
      %p167 = pneg %p166
      // Predicated region
      $region33: #{tpu_custom_call.1} parent=5 // pred_check
        _
      $region34: #{tpu_custom_call.1} parent=5 // pred_check_branch
        %169 = sbr.rel (%p166) target = $region36
      $region35: #{tpu_custom_call.1} parent=5 // pred_region
        %s170 = ssub.s32 %s13, 1
        %p171 = scmp.lt.s32.totalorder %s18, 1
        %s172 = scalar_select %p171, %s18, 1
        %s173 = smul.addr %s172, 4
        %s174 = smul.addr %s173, 4
        %s175 = scalar_lea.vmem %s0, %s174
        %p176 = pneg %p39
        %p177 = pneg %p36
        %p178 = pneg %p60
        %p179 = pneg %p57
        %p180 = pneg %p81
        %p181 = pneg %p78
        %p182 = pneg %p102
        %p183 = pneg %p99
        %p184 = pneg %p128
        %p185 = pneg %p125
        %s186 = sand.u32 %s115, 1
        %s187 = scalar_lea.sflag [#allocation4], %s186
        %s188 = sand.u32 %s115, 1
        %s189 = smul.addr %s188, 16
        %s190 = scalar_lea.vmem [#allocation3], %s189
        %p191 = scmp.lt.s32.totalorder %s18, 1
        %s192 = scalar_select %p191, %s18, 1
        %s193 = smul.addr %s192, 4
        %s194 = smul.addr %s193, 4
        %s195 = scalar_lea.vmem %s0, %s194
        %vm197 = vcmask 128000
        %198 = vst.msk [vmem:[#allocation2] sm:$0x3f] %vm197, 0.0
        %199 = vst.msk [vmem:[#allocation2 + $0x8] sm:$0x3f] %vm197, 0.0
        %200 = vst.msk [vmem:[#allocation2 + $0x10] sm:$0x3f] %vm197, 0.0
        %201 = vst.msk [vmem:[#allocation2 + $0x18] sm:$0x3f] %vm197, 0.0
        %202 = vst.msk [vmem:[#allocation2 + $0x20] sm:$0x3f] %vm197, 0.0
        %203 = vst.msk [vmem:[#allocation2 + $0x28] sm:$0x3f] %vm197, 0.0
        %v204 = vld [vmem:[%s195] sm:$0xf]
        %v205 = vld [vmem:[%s195 + $0x4] sm:$0xf]
        %v206 = vld [vmem:[%s195 + $0x8] sm:$0xf]
        %v207 = vld [vmem:[%s195 + $0xc] sm:$0xf]
        %s208 = scalar_lea.vmem [#allocation2], 8
        %vm209 = vcmask 125952
        %210 = vst.msk [vmem:[%s208 + $0x1] sm:$0xf] %vm209, %v204
        %211 = vst.msk [vmem:[%s208 + $0x9] sm:$0xf] %vm209, %v205
        %212 = vst.msk [vmem:[%s208 + $0x11] sm:$0xf] %vm209, %v206
        %213 = vst.msk [vmem:[%s208 + $0x19] sm:$0xf] %vm209, %v207
        %v214 = vld [vmem:[#allocation2] sm:$0x3f]
        %v215 = vld [vmem:[#allocation2 + $0x8] sm:$0x3f]
        %v216 = vld [vmem:[#allocation2 + $0x10] sm:$0x3f]
        %v217 = vld [vmem:[#allocation2 + $0x18] sm:$0x3f]
        %v218 = vld [vmem:[#allocation2 + $0x20] sm:$0x3f]
        %v219 = vld [vmem:[#allocation2 + $0x28] sm:$0x3f]
        %v220 = vpack.c.bf16 %v214, %v214
        %v221 = vpack.c.bf16 %v215, %v215
        %v222 = vpack.c.bf16 %v216, %v216
        %v223 = vpack.c.bf16 %v217, %v217
        %v224 = vpack.c.bf16 %v218, %v218
        %v225 = vpack.c.bf16 %v219, %v219
        %v227 = vshrl.u32 %v220, 16
        %v229 = vshll.u32 %v220, 16
        %v231 = vrot.slane %v229, 1
        %v232 = vor.u32 %v227, %v231
        %v234 = vshrl.u32 %v221, 16
        %v236 = vshll.u32 %v221, 16
        %v238 = vrot.slane %v236, 1
        %v239 = vor.u32 %v234, %v238
        %v241 = vshrl.u32 %v222, 16
        %v243 = vshll.u32 %v222, 16
        %v245 = vrot.slane %v243, 1
        %v246 = vor.u32 %v241, %v245
        %v248 = vshrl.u32 %v223, 16
        %v250 = vshll.u32 %v223, 16
        %v252 = vrot.slane %v250, 1
        %v253 = vor.u32 %v248, %v252
        %254 = vrot.lane.b32.xlu0 %v232, 16
        %v255 = vpop.permute.xlu0 %254
        %256 = vrot.lane.b32.xlu0 %v239, 16
        %v257 = vpop.permute.xlu0 %256
        %258 = vrot.lane.b32.xlu0 %v246, 16
        %v259 = vpop.permute.xlu0 %258
        %260 = vrot.lane.b32.xlu0 %v253, 16
        %v261 = vpop.permute.xlu0 %260
        %v266 = vrot.slane %v220, 1
        %v267 = vrot.slane %v221, 1
        %v268 = vrot.slane %v222, 1
        %v269 = vrot.slane %v223, 1
        %270 = vrot.lane.b32.xlu0 %v266, 32
        %v271 = vpop.permute.xlu0 %270
        %272 = vrot.lane.b32.xlu0 %v267, 32
        %v273 = vpop.permute.xlu0 %272
        %274 = vrot.lane.b32.xlu0 %v268, 32
        %v275 = vpop.permute.xlu0 %274
        %276 = vrot.lane.b32.xlu0 %v269, 32
        %v277 = vpop.permute.xlu0 %276
        %279 = vrot.lane.b32.xlu0 %v221, 48
        %v280 = vpop.permute.xlu0 %279
        %281 = vrot.lane.b32.xlu0 %v222, 48
        %v282 = vpop.permute.xlu0 %281
        %283 = vrot.lane.b32.xlu0 %v223, 48
        %v284 = vpop.permute.xlu0 %283
        %285 = vrot.lane.b32.xlu0 %v224, 48
        %v286 = vpop.permute.xlu0 %285
        %v288 = vshrl.u32 %v224, 16
        %v290 = vshll.u32 %v224, 16
        %v292 = vrot.slane %v290, 1
        %v293 = vor.u32 %v288, %v292
        %294 = vrot.lane.b32.xlu0 %v239, 64
        %v295 = vpop.permute.xlu0 %294
        %296 = vrot.lane.b32.xlu0 %v246, 64
        %v297 = vpop.permute.xlu0 %296
        %298 = vrot.lane.b32.xlu0 %v253, 64
        %v299 = vpop.permute.xlu0 %298
        %300 = vrot.lane.b32.xlu0 %v293, 64
        %v301 = vpop.permute.xlu0 %300
        %v302 = vrot.slane %v224, 1
        %303 = vrot.lane.b32.xlu0 %v267, 80
        %v304 = vpop.permute.xlu0 %303
        %305 = vrot.lane.b32.xlu0 %v268, 80
        %v306 = vpop.permute.xlu0 %305
        %307 = vrot.lane.b32.xlu0 %v269, 80
        %v308 = vpop.permute.xlu0 %307
        %309 = vrot.lane.b32.xlu0 %v302, 80
        %v310 = vpop.permute.xlu0 %309
        %312 = vrot.lane.b32.xlu0 %v222, 96
        %v313 = vpop.permute.xlu0 %312
        %314 = vrot.lane.b32.xlu0 %v223, 96
        %v315 = vpop.permute.xlu0 %314
        %316 = vrot.lane.b32.xlu0 %v224, 96
        %v317 = vpop.permute.xlu0 %316
        %318 = vrot.lane.b32.xlu0 %v225, 96
        %v319 = vpop.permute.xlu0 %318
        %v321 = vshrl.u32 %v225, 16
        %v323 = vshll.u32 %v225, 16
        %v325 = vrot.slane %v323, 1
        %v326 = vor.u32 %v321, %v325
        %327 = vrot.lane.b32.xlu0 %v246, 112
        %v328 = vpop.permute.xlu0 %327
        %329 = vrot.lane.b32.xlu0 %v253, 112
        %v330 = vpop.permute.xlu0 %329
        %331 = vrot.lane.b32.xlu0 %v293, 112
        %v332 = vpop.permute.xlu0 %331
        %333 = vrot.lane.b32.xlu0 %v326, 112
        %v334 = vpop.permute.xlu0 %333
        %v335 = vrot.slane %v225, 1
        %vm336 = vcmask 130048
        %v338 = vsel %vm336, %v220, %v255
        %v340 = vsel %vm336, %v221, %v257
        %v342 = vsel %vm336, %v222, %v259
        %v344 = vsel %vm336, %v223, %v261
        %vm345 = vcmask 261120
        %v347 = vsel %vm345, %v338, %v271
        %v349 = vsel %vm345, %v340, %v273
        %v351 = vsel %vm345, %v342, %v275
        %v353 = vsel %vm345, %v344, %v277
        %vm354 = vcmask 392192
        %v356 = vsel %vm354, %v347, %v280
        %v358 = vsel %vm354, %v349, %v282
        %v360 = vsel %vm354, %v351, %v284
        %v362 = vsel %vm354, %v353, %v286
        %vm363 = vcmask 523264
        %v365 = vsel %vm363, %v356, %v295
        %v367 = vsel %vm363, %v358, %v297
        %v369 = vsel %vm363, %v360, %v299
        %v371 = vsel %vm363, %v362, %v301
        %vm372 = vcmask 654336
        %v374 = vsel %vm372, %v365, %v304
        %v376 = vsel %vm372, %v367, %v306
        %v378 = vsel %vm372, %v369, %v308
        %v380 = vsel %vm372, %v371, %v310
        %vm381 = vcmask 785408
        %v383 = vsel %vm381, %v374, %v313
        %v385 = vsel %vm381, %v376, %v315
        %v387 = vsel %vm381, %v378, %v317
        %v389 = vsel %vm381, %v380, %v319
        %vm390 = vcmask 916480
        %v392 = vsel %vm390, %v383, %v328
        %v394 = vsel %vm390, %v385, %v330
        %v396 = vsel %vm390, %v387, %v332
        %v398 = vsel %vm390, %v389, %v334
        %v403 = vcombine.low %v392, %v268
        %v405 = vunpack.c.l.s4 1983009808
        %v406 = vunpack.c.0.s8 %v405
        %v407 = vlaneseq
        %v408 = vshrl.u32 %v407, 7
        %v409 = vsub.s32 %v406, %v408
        %v410 = vrot.slane %v403, %v409
        %v411 = vcombine.low %v394, %v269
        %v413 = vunpack.c.l.s4 1983009808
        %v414 = vunpack.c.0.s8 %v413
        %v415 = vlaneseq
        %v416 = vshrl.u32 %v415, 7
        %v417 = vsub.s32 %v414, %v416
        %v418 = vrot.slane %v411, %v417
        %v419 = vcombine.low %v396, %v302
        %v421 = vunpack.c.l.s4 1983009808
        %v422 = vunpack.c.0.s8 %v421
        %v423 = vlaneseq
        %v424 = vshrl.u32 %v423, 7
        %v425 = vsub.s32 %v422, %v424
        %v426 = vrot.slane %v419, %v425
        %v427 = vcombine.low %v398, %v335
        %v429 = vunpack.c.l.s4 1983009808
        %v430 = vunpack.c.0.s8 %v429
        %v431 = vlaneseq
        %v432 = vshrl.u32 %v431, 7
        %v433 = vsub.s32 %v430, %v432
        %v434 = vrot.slane %v427, %v433
        %v435 = vld [vmem:[%s1] sm:$0xf]
        %v436 = vld [vmem:[%s1 + $0x4] sm:$0xf]
        %v437 = vld [vmem:[%s1 + $0x8] sm:$0xf]
        %v438 = vld [vmem:[%s1 + $0xc] sm:$0xf]
        %v439 = vld [vmem:[%s1 + $0x10] sm:$0xf]
        %v440 = vld [vmem:[%s1 + $0x14] sm:$0xf]
        %v441 = vld [vmem:[%s1 + $0x18] sm:$0xf]
        %v442 = vld [vmem:[%s1 + $0x1c] sm:$0xf]
        %v443 = vld [vmem:[%s1 + $0x20] sm:$0xf]
        %v444 = vld [vmem:[%s1 + $0x24] sm:$0xf]
        %v445 = vld [vmem:[%s1 + $0x28] sm:$0xf]
        %v446 = vld [vmem:[%s1 + $0x2c] sm:$0xf]
        %v447 = vld [vmem:[%s1 + $0x30] sm:$0xf]
        %v448 = vld [vmem:[%s1 + $0x34] sm:$0xf]
        %v449 = vld [vmem:[%s1 + $0x38] sm:$0xf]
        %v450 = vld [vmem:[%s1 + $0x3c] sm:$0xf]
        %v451 = vld [vmem:[%s1 + $0x40] sm:$0xf]
        %v452 = vld [vmem:[%s1 + $0x44] sm:$0xf]
        %v453 = vcombine.low %v410, %v418
        %v454 = vcombine.low %v426, %v434
        %v456 = vunpack.c.l.s4 1983009808
        %v457 = vunpack.c.0.s8 %v456
        %v458 = vlaneseq
        %v459 = vshrl.u32 %v458, 7
        %v460 = vsub.s32 %v457, %v459
        %v461 = vrot.slane %v453, %v460
        %v463 = vunpack.c.l.s4 1983009808
        %v464 = vunpack.c.0.s8 %v463
        %v465 = vlaneseq
        %v466 = vshrl.u32 %v465, 7
        %v467 = vsub.s32 %v464, %v466
        %v468 = vrot.slane %v454, %v467
        %v469 = vcombine.low %v461, %v468
        %v470 = vcombine.high %v461, %v468
        %v490 = vunpack.c.l.b16 %v435
        %v491 = vunpack.c.l.b16 %v436
        %v492 = vunpack.c.l.b16 %v437
        %v493 = vunpack.c.l.b16 %v438
        %v494 = vunpack.c.l.b16 %v439
        %v495 = vunpack.c.l.b16 %v440
        %v496 = vunpack.c.l.b16 %v441
        %v497 = vunpack.c.l.b16 %v442
        %v498 = vunpack.c.l.b16 %v443
        %v499 = vunpack.c.l.b16 %v444
        %v500 = vunpack.c.l.b16 %v445
        %v501 = vunpack.c.l.b16 %v446
        %v502 = vunpack.c.l.b16 %v447
        %v503 = vunpack.c.l.b16 %v448
        %v504 = vunpack.c.l.b16 %v449
        %v505 = vunpack.c.l.b16 %v450
        %v506 = vunpack.c.l.b16 %v451
        %v507 = vunpack.c.l.b16 %v452
        %v508 = vpack.c.b16 %v491, %v490
        %v509 = vpack.c.b16 %v493, %v492
        %v510 = vpack.c.b16 %v495, %v494
        %v511 = vpack.c.b16 %v497, %v496
        %v512 = vpack.c.b16 %v499, %v498
        %v513 = vpack.c.b16 %v501, %v500
        %v514 = vpack.c.b16 %v503, %v502
        %v515 = vpack.c.b16 %v505, %v504
        %v516 = vpack.c.b16 %v507, %v506
        %v527 = vsel %vm336, %v470, 0
        %529 = vmatprep.subr.bf16.mxu0 0
        %530 = vmatpush1.bf16.msra.mxu0 %v515
        %531 = vmatprep.subr.bf16.mxu0 0
        %532 = vmatpush1.bf16.msra.mxu0 %v514
        %533 = vmatprep.subr.bf16.mxu0 0
        %534 = vmatpush1.bf16.msra.mxu0 %v513
        %535 = vmatprep.subr.bf16.mxu0 0
        %536 = vmatpush1.bf16.msra.mxu0 %v512
        %537 = vmatprep.subr.bf16.mxu0 0
        %538 = vmatpush1.bf16.msra.mxu0 %v511
        %539 = vmatprep.subr.bf16.mxu0 0
        %540 = vmatpush1.bf16.msra.mxu0 %v510
        %541 = vmatprep.subr.bf16.mxu0 0
        %542 = vmatpush1.bf16.msra.mxu0 %v509
        %543 = vmatprep.subr.bf16.mxu0 0
        %544 = vmatpush1.bf16.msra.mxu0 %v508
        %545 = vmatprep.subr.bf16.mxu0 0
        %546 = vmatpush2.bf16.msra.mxu0 0
        %547 = vmatprep.subr.bf16.mxu0 0
        %548 = vmatpush2.bf16.msra.mxu0 0
        %549 = vmatprep.subr.bf16.mxu0 0
        %550 = vmatpush2.bf16.msra.mxu0 0
        %551 = vmatprep.subr.bf16.mxu0 0
        %552 = vmatpush2.bf16.msra.mxu0 0
        %553 = vmatprep.subr.bf16.mxu0 0
        %554 = vmatpush2.bf16.msra.mxu0 0
        %555 = vmatprep.subr.bf16.mxu0 0
        %556 = vmatpush2.bf16.msra.mxu0 0
        %557 = vmatprep.subr.bf16.mxu0 0
        %558 = vmatpush2.bf16.msra.mxu0 0
        %559 = vmatprep.subr.bf16.mxu0 0
        %560 = vmatpush2.bf16.msra.mxu0 %v516
        %561 = vmatprep.mubr.bf16.mxu0 %v527
        %562 = vmatmul.mubr.bf16.gmra.mxu0 %v469
        %v563 = vpop.f32.mrf.mxu0
        %v564 = vadd.f32 0.0, %v563
        %v565 = vpop.f32.mrf.mxu0
        %v566 = vpop.f32.mrf.mxu0
        %v567 = vadd.f32 0.0, %v566
        %v568 = vpop.f32.mrf.mxu0
        %569 = vdwg.mxu0
        %v570 = vld [vmem:[%s2] sm:$0x1]
        %v572 = vlaneseq
        %v573 = vshrl.u32 %v572, 7
        %v574 = vsub.s32 0, %v573
        %v575 = vrot.slane %v570, %v574
        %v577 = vmul.f32 %v564, %v575
        %v578 = vmul.f32 %v567, %v575
        %v579 = vld [vmem:[%s3] sm:$0x1]
        %v581 = vlaneseq
        %v582 = vshrl.u32 %v581, 7
        %v583 = vsub.s32 0, %v582
        %v584 = vrot.slane %v579, %v583
        %v586 = vadd.f32 %v577, %v584
        %v587 = vadd.f32 %v578, %v584
        %v588 = vmax.f32 %v586, 0.0
        %v589 = vmax.f32 %v587, 0.0
        %v592 = vcombine.high %v588, %v588
        %v593 = vcombine.high %v589, %v589
        %vm596 = vcmask 60416
        %597 = vst.msk [vmem:[%s190] sm:$0xf] %vm596, %v588
        %598 = vst.msk [vmem:[%s190 + $0x4] sm:$0xf] %vm596, %v592
        %599 = vst.msk [vmem:[%s190 + $0x8] sm:$0xf] %vm596, %v589
        %600 = vst.msk [vmem:[%s190 + $0xc] sm:$0xf] %vm596, %v593
        %s601 = sand.u32 %s115, 1
        %s602 = scalar_lea.sflag [#allocation4], %s601
        %s603 = sand.u32 %s115, 1
        %s604 = smul.addr %s603, 16
        %s605 = scalar_lea.vmem [#allocation3], %s604
        // Predicated region
        $region37: #{tpu_custom_call.1} parent=35 // pred_check
          %p606 = pneg %p125
        $region38: #{tpu_custom_call.1} parent=35 // pred_check_branch
          %608 = sbr.rel (%p606) target = $region40
        $region39: #{tpu_custom_call.1} parent=35 // pred_region
          %s610 = ssub.s32 256, 256
          %611 = vsyncadd %s602, %s610
          %s612 = smul.addr %s18, 4
          %s613 = smul.addr %s612, 64
          %s614 = scalar_lea.hbm %s4, %s613
          %s615 = sshll.u32 %s605, 4
          %s616 = int_to_ptr.vmem [resolvable:$true] %s615
          %621 = dma.vmem_to_hbm [thread:$0]  %s616, 256, %s614, %s602, 64, 64, 4
        $region40: #{tpu_custom_call.1} parent=35 // pred_fallthru
          _
      $region36: #{tpu_custom_call.1} parent=5 // pred_fallthru
        _
      %p622 = scmp.le.s32.totalorder 2, %s13
      // Predicated region
      $region41: #{tpu_custom_call.1} parent=5 // pred_check
        %p623 = pneg %p622
      $region42: #{tpu_custom_call.1} parent=5 // pred_check_branch
        %625 = sbr.rel (%p623) target = $region44
      $region43: #{tpu_custom_call.1} parent=5 // pred_region
        %s626 = ssub.s32 %s13, 2
        // Predicated region
        $region45: #{tpu_custom_call.1} parent=43 // pred_check
          %p627 = pneg %p131
        $region46: #{tpu_custom_call.1} parent=43 // pred_check_branch
          %629 = sbr.rel (%p627) target = $region48
        $region47: #{tpu_custom_call.1} parent=43 // pred_region
          %s630 = sand.u32 %s116, 1
          %s631 = scalar_lea.sflag [#allocation4], %s630
          %s632 = sand.u32 %s116, 1
          %s633 = smul.addr %s632, 16
          %s634 = scalar_lea.vmem [#allocation3], %s633
          %635 = dma.done %s631, 256
        $region48: #{tpu_custom_call.1} parent=43 // pred_fallthru
          _
      $region44: #{tpu_custom_call.1} parent=5 // pred_fallthru
        _
    $region6: #{tpu_custom_call.1} parent=1 // loop_footer
      %s17 = sadd.s32 1, %s13
    $region7: #{tpu_custom_call.1} parent=1 // loop_footer_branch
      %12 = sbr.rel target = $region3
    $region8: #{tpu_custom_call.1} parent=1 // loop_exit
      _
    %636 = vsyncpa [#allocation4], 1
    %s637 = scalar_lea.sflag [#allocation4], 1
    %638 = vsyncpa %s637, 1

</llo_original>
